<compile_context>
chip_gen: v6e
topology: v6e:2x2x1
jax: 0.10.0
libtpu: 0.0.40
codegen_flags: <defaults>
</compile_context>

<pallas_src>
import math
import numpy as np
import jax
import jax.numpy as jnp
from jax.experimental import pallas as pl
from jax.experimental.pallas import tpu as pltpu


def _round_up(x, m):
    return -(-x // m) * m


def _level_geometry(H, W, levels):
    """Per-level (kh, kw, sh, sw, oh, ow), matching the PyTorch module."""
    geoms = []
    for l in range(levels):
        kh = int(math.ceil(H / (l + 1)))
        kw = int(math.ceil(W / (l + 1)))
        sh = int(math.floor(H / (l + 1)))
        sw = int(math.floor(W / (l + 1)))
        if sh == 0 or sw == 0:
            raise ValueError(
                f"SPP level {l}: stride would be 0 for H={H}, W={W}; "
                "PyTorch MaxPool2d also rejects stride=0.")
        oh = (H - kh) // sh + 1
        ow = (W - kw) // sw + 1
        geoms.append((kh, kw, sh, sw, oh, ow))
    return geoms


def _make_spp_kernel(row_plan):
    """row_plan: tuple of (r0, kh, ((c0, kw), ...)) per bin-row, in
    level -> bin-row order; bins are emitted level -> i -> j so the packed
    bin index matches the wrapper's per-level slicing offsets."""

    def kernel(x_ref, o_ref):
        # x_ref: (n_blk, c_tile, H, W)  -- W on lanes.
        # o_ref: (n_blk, c_tile, total_bins).
        outs = []
        for (r0, kh, cols) in row_plan:
            # Shared kh row-fold for every bin of this bin-row.  Ref-sliced per
            # row: only one (n_blk, c_tile, W) row is loaded at a time and the
            # only live value is the same-shaped accumulator (pure VPU maxima).
            acc = x_ref[:, :, r0, :]
            for r in range(1, kh):
                acc = jnp.maximum(acc, x_ref[:, :, r0 + r, :])
            # Each bin of the row: one small cross-lane reduce over its kw
            # segment of the shared row-max slab.
            for (c0, kw) in cols:
                outs.append(jnp.max(acc[:, :, c0:c0 + kw], axis=-1,
                                    keepdims=True))
        # One batched, full-block store instead of per-bin masked stores.
        o_ref[...] = jnp.concatenate(outs, axis=-1).astype(o_ref.dtype)

    return kernel


def _legal_c_tiles(C):
    # Channel tile sits on the second-to-last dim of the output block, so it
    # must be a multiple of 8 or the full channel extent.
    return [d for d in range(1, C + 1) if C % d == 0 and (d == C or d % 8 == 0)]


def _block_bytes(nb, ct, H, W, total_bins, itemsize):
    """Approximate double-buffered VMEM footprint of one grid step's blocks."""
    inp = nb * ct * _round_up(H, 8) * _round_up(W, 128) * itemsize
    out = nb * _round_up(ct, 8) * _round_up(total_bins, 128) * itemsize
    return 2 * (inp + out)


def _choose_blocks(N, C, H, W, total_bins, itemsize, block_budget, acc_budget):
    w_pad = _round_up(W, 128)
    c_cands = _legal_c_tiles(C)
    n_cands = [d for d in range(1, N + 1) if N % d == 0]

    def fits(nb, ct):
        # Block budget (pipelined VMEM) + bound on the live row-max
        # accumulator (n_blk, c_tile, W) so the unrolled fold does not spill.
        return (_block_bytes(nb, ct, H, W, total_bins, itemsize) <= block_budget
                and nb * ct * w_pad * itemsize <= acc_budget)

    c_tile = max((d for d in c_cands if fits(1, d)), default=min(c_cands))
    n_blk = max((d for d in n_cands if fits(d, c_tile)), default=1)

    # Keep >= 2 grid steps so v7x's two TensorCores both get work (both grid
    # axes are "parallel"); harmless on single-TC v5e/v6e.
    if (N // n_blk) * (C // c_tile) == 1:
        if N > 1:
            n_blk = max(d for d in n_cands if d < N)
        else:
            smaller = [d for d in c_cands if d < c_tile]
            if smaller:
                c_tile = max(smaller)
    return n_blk, c_tile


def spatial_pyramid_pooling(x, levels):
    """Pallas implementation of SpatialPyramidPooling.forward (NCHW input)."""
    N, C, H, W = x.shape
    geoms = _level_geometry(H, W, levels)
    itemsize = jnp.dtype(x.dtype).itemsize

    # Compile-time plan: level -> bin-row -> (column starts), bins in
    # level -> i -> j order.
    row_plan = []
    total_bins = 0
    for (kh, kw, sh, sw, oh, ow) in geoms:
        for i in range(oh):
            row_plan.append((i * sh, kh, tuple((j * sw, kw) for j in range(ow))))
            total_bins += ow

    # Generation-aware VMEM budgets (v7x: 64 MiB VMEM; v5e/v6e: 128 MiB).
    try:
        info = pltpu.get_tpu_info()
        vmem_cap = int(getattr(info, "vmem_capacity_bytes", 64 << 20))
    except Exception:
        vmem_cap = 64 << 20
    if vmem_cap >= (96 << 20):          # 128 MiB-class parts (v5e / v6e)
        block_budget, vmem_limit = 48 << 20, 100 << 20
    else:                               # 64 MiB-class parts (v7x) / unknown
        block_budget, vmem_limit = 24 << 20, 48 << 20
    acc_budget = 1 << 20

    # Corner case: C has no multiple-of-8 divisor and the full-C block would
    # not fit -> pad channels so the channel axis can be tiled.  Pad channels
    # are independent under per-channel max pooling and sliced off below, so
    # the pad value is irrelevant.  (Only costs an extra pass when needed.)
    c_min = min(_legal_c_tiles(C))
    if C % 8 != 0 and _block_bytes(1, c_min, H, W, total_bins, itemsize) > block_budget:
        C_pad = _round_up(C, 8)
        x_in = jnp.pad(x, ((0, 0), (0, C_pad - C), (0, 0), (0, 0)))
    else:
        C_pad, x_in = C, x

    n_blk, c_tile = _choose_blocks(N, C_pad, H, W, total_bins, itemsize,
                                   block_budget, acc_budget)

    est = _block_bytes(n_blk, c_tile, H, W, total_bins, itemsize)
    vmem_limit = int(min(max(vmem_limit, est + (4 << 20)),
                         max(vmem_cap - (8 << 20), 32 << 20)))

    kernel = _make_spp_kernel(tuple(row_plan))
    pooled = pl.pallas_call(
        kernel,
        out_shape=jax.ShapeDtypeStruct((N, C_pad, total_bins), x.dtype),
        grid=(N // n_blk, C_pad // c_tile),
        in_specs=[pl.BlockSpec((n_blk, c_tile, H, W), lambda n, c: (n, c, 0, 0))],
        out_specs=pl.BlockSpec((n_blk, c_tile, total_bins),
                               lambda n, c: (n, c, 0)),
        compiler_params=pltpu.CompilerParams(
            dimension_semantics=("parallel", "parallel"),
            vmem_limit_bytes=vmem_limit,
        ),
    )(x_in)

    pooled = pooled[:, :C, :]           # drop pad channels (if any)

    # Torch flatten ordering: per level, (N, C, oh, ow).view(N, -1) flattens
    # c-major, then i, then j -- with bins packed level -> i -> j this is a
    # plain reshape per level.  Tiny output, pure layout glue.
    feats = []
    off = 0
    for (kh, kw, sh, sw, oh, ow) in geoms:
        nb = oh * ow
        feats.append(pooled[:, :, off:off + nb].reshape(N, C * nb))
        off += nb
    return jnp.concatenate(feats, axis=1)


def _reference_spp(x_np, levels):
    """Pure-numpy reference replicating the PyTorch module semantics."""
    N, C, H, W = x_np.shape
    outs = []
    for l in range(levels):
        kh = int(np.ceil(H / (l + 1)))
        kw = int(np.ceil(W / (l + 1)))
        sh = int(np.floor(H / (l + 1)))
        sw = int(np.floor(W / (l + 1)))
        oh = (H - kh) // sh + 1
        ow = (W - kw) // sw + 1
        pooled = np.empty((N, C, oh, ow), dtype=x_np.dtype)
        for i in range(oh):
            for j in range(ow):
                pooled[:, :, i, j] = x_np[
                    :, :, i * sh:i * sh + kh, j * sw:j * sw + kw
                ].max(axis=(2, 3))
        outs.append(pooled.reshape(N, -1))
    return np.concatenate(outs, axis=1)


if __name__ == "__main__":
    LEVELS = 3
    key = jax.random.PRNGKey(0)
    # Small shapes consistent with the module's NCHW forward.
    x = jax.random.normal(key, (2, 4, 16, 16), dtype=jnp.float32)

    out = spatial_pyramid_pooling(x, LEVELS)
    out = jax.block_until_ready(out)

    # Expected feature width: C * sum_l oh_l*ow_l = 4 * (1 + 4 + 9) = 56.
    ref = _reference_spp(np.asarray(x), LEVELS)
    assert out.shape == ref.shape, (out.shape, ref.shape)
    np.testing.assert_allclose(np.asarray(out), ref, rtol=1e-6, atol=1e-6)

    print("KERNEL_OK")
</pallas_src>

<mosaic_0001>
module attributes {stable_mosaic.version = 11 : i64} {
  func.func @kernel(%arg0: i32, %arg1: i32, %arg2: memref<1x4x16x16xf32, #tpu.memory_space<vmem>>, %arg3: memref<1x4x14xf32, #tpu.memory_space<vmem>>) attributes {dimension_semantics = [#tpu.dimension_semantics<parallel>, #tpu.dimension_semantics<parallel>], iteration_bounds = array<i64: 2, 1>, scalar_prefetch = 0 : i64, scratch_operands = 0 : i64, tpu.core_type = #tpu.core_type<tc>, window_params = [{transform_indices = @transform_0, window_bounds = array<i64: 1, 4, 16, 16>}, {transform_indices = @transform_1, window_bounds = array<i64: 1, 4, 14>}]} {
    %c0 = arith.constant 0 : index
    %c0_0 = arith.constant 0 : index
    %c0_1 = arith.constant 0 : index
    %c0_2 = arith.constant 0 : index
    %0 = vector.load %arg2[%c0, %c0_0, %c0_1, %c0_2] : memref<1x4x16x16xf32, #tpu.memory_space<vmem>>, vector<1x4x1x16xf32>
    %1 = vector.shape_cast %0 : vector<1x4x1x16xf32> to vector<1x4x16xf32>
    %c0_3 = arith.constant 0 : index
    %c0_4 = arith.constant 0 : index
    %c1 = arith.constant 1 : index
    %c0_5 = arith.constant 0 : index
    %2 = vector.load %arg2[%c0_3, %c0_4, %c1, %c0_5] : memref<1x4x16x16xf32, #tpu.memory_space<vmem>>, vector<1x4x1x16xf32>
    %3 = vector.shape_cast %2 : vector<1x4x1x16xf32> to vector<1x4x16xf32>
    %4 = arith.maximumf %1, %3 : vector<1x4x16xf32>
    %c0_6 = arith.constant 0 : index
    %c0_7 = arith.constant 0 : index
    %c2 = arith.constant 2 : index
    %c0_8 = arith.constant 0 : index
    %5 = vector.load %arg2[%c0_6, %c0_7, %c2, %c0_8] : memref<1x4x16x16xf32, #tpu.memory_space<vmem>>, vector<1x4x1x16xf32>
    %6 = vector.shape_cast %5 : vector<1x4x1x16xf32> to vector<1x4x16xf32>
    %7 = arith.maximumf %4, %6 : vector<1x4x16xf32>
    %c0_9 = arith.constant 0 : index
    %c0_10 = arith.constant 0 : index
    %c3 = arith.constant 3 : index
    %c0_11 = arith.constant 0 : index
    %8 = vector.load %arg2[%c0_9, %c0_10, %c3, %c0_11] : memref<1x4x16x16xf32, #tpu.memory_space<vmem>>, vector<1x4x1x16xf32>
    %9 = vector.shape_cast %8 : vector<1x4x1x16xf32> to vector<1x4x16xf32>
    %10 = arith.maximumf %7, %9 : vector<1x4x16xf32>
    %c0_12 = arith.constant 0 : index
    %c0_13 = arith.constant 0 : index
    %c4 = arith.constant 4 : index
    %c0_14 = arith.constant 0 : index
    %11 = vector.load %arg2[%c0_12, %c0_13, %c4, %c0_14] : memref<1x4x16x16xf32, #tpu.memory_space<vmem>>, vector<1x4x1x16xf32>
    %12 = vector.shape_cast %11 : vector<1x4x1x16xf32> to vector<1x4x16xf32>
    %13 = arith.maximumf %10, %12 : vector<1x4x16xf32>
    %c0_15 = arith.constant 0 : index
    %c0_16 = arith.constant 0 : index
    %c5 = arith.constant 5 : index
    %c0_17 = arith.constant 0 : index
    %14 = vector.load %arg2[%c0_15, %c0_16, %c5, %c0_17] : memref<1x4x16x16xf32, #tpu.memory_space<vmem>>, vector<1x4x1x16xf32>
    %15 = vector.shape_cast %14 : vector<1x4x1x16xf32> to vector<1x4x16xf32>
    %16 = arith.maximumf %13, %15 : vector<1x4x16xf32>
    %c0_18 = arith.constant 0 : index
    %c0_19 = arith.constant 0 : index
    %c6 = arith.constant 6 : index
    %c0_20 = arith.constant 0 : index
    %17 = vector.load %arg2[%c0_18, %c0_19, %c6, %c0_20] : memref<1x4x16x16xf32, #tpu.memory_space<vmem>>, vector<1x4x1x16xf32>
    %18 = vector.shape_cast %17 : vector<1x4x1x16xf32> to vector<1x4x16xf32>
    %19 = arith.maximumf %16, %18 : vector<1x4x16xf32>
    %c0_21 = arith.constant 0 : index
    %c0_22 = arith.constant 0 : index
    %c7 = arith.constant 7 : index
    %c0_23 = arith.constant 0 : index
    %20 = vector.load %arg2[%c0_21, %c0_22, %c7, %c0_23] : memref<1x4x16x16xf32, #tpu.memory_space<vmem>>, vector<1x4x1x16xf32>
    %21 = vector.shape_cast %20 : vector<1x4x1x16xf32> to vector<1x4x16xf32>
    %22 = arith.maximumf %19, %21 : vector<1x4x16xf32>
    %c0_24 = arith.constant 0 : index
    %c0_25 = arith.constant 0 : index
    %c8 = arith.constant 8 : index
    %c0_26 = arith.constant 0 : index
    %23 = vector.load %arg2[%c0_24, %c0_25, %c8, %c0_26] : memref<1x4x16x16xf32, #tpu.memory_space<vmem>>, vector<1x4x1x16xf32>
    %24 = vector.shape_cast %23 : vector<1x4x1x16xf32> to vector<1x4x16xf32>
    %25 = arith.maximumf %22, %24 : vector<1x4x16xf32>
    %c0_27 = arith.constant 0 : index
    %c0_28 = arith.constant 0 : index
    %c9 = arith.constant 9 : index
    %c0_29 = arith.constant 0 : index
    %26 = vector.load %arg2[%c0_27, %c0_28, %c9, %c0_29] : memref<1x4x16x16xf32, #tpu.memory_space<vmem>>, vector<1x4x1x16xf32>
    %27 = vector.shape_cast %26 : vector<1x4x1x16xf32> to vector<1x4x16xf32>
    %28 = arith.maximumf %25, %27 : vector<1x4x16xf32>
    %c0_30 = arith.constant 0 : index
    %c0_31 = arith.constant 0 : index
    %c10 = arith.constant 10 : index
    %c0_32 = arith.constant 0 : index
    %29 = vector.load %arg2[%c0_30, %c0_31, %c10, %c0_32] : memref<1x4x16x16xf32, #tpu.memory_space<vmem>>, vector<1x4x1x16xf32>
    %30 = vector.shape_cast %29 : vector<1x4x1x16xf32> to vector<1x4x16xf32>
    %31 = arith.maximumf %28, %30 : vector<1x4x16xf32>
    %c0_33 = arith.constant 0 : index
    %c0_34 = arith.constant 0 : index
    %c11 = arith.constant 11 : index
    %c0_35 = arith.constant 0 : index
    %32 = vector.load %arg2[%c0_33, %c0_34, %c11, %c0_35] : memref<1x4x16x16xf32, #tpu.memory_space<vmem>>, vector<1x4x1x16xf32>
    %33 = vector.shape_cast %32 : vector<1x4x1x16xf32> to vector<1x4x16xf32>
    %34 = arith.maximumf %31, %33 : vector<1x4x16xf32>
    %c0_36 = arith.constant 0 : index
    %c0_37 = arith.constant 0 : index
    %c12 = arith.constant 12 : index
    %c0_38 = arith.constant 0 : index
    %35 = vector.load %arg2[%c0_36, %c0_37, %c12, %c0_38] : memref<1x4x16x16xf32, #tpu.memory_space<vmem>>, vector<1x4x1x16xf32>
    %36 = vector.shape_cast %35 : vector<1x4x1x16xf32> to vector<1x4x16xf32>
    %37 = arith.maximumf %34, %36 : vector<1x4x16xf32>
    %c0_39 = arith.constant 0 : index
    %c0_40 = arith.constant 0 : index
    %c13 = arith.constant 13 : index
    %c0_41 = arith.constant 0 : index
    %38 = vector.load %arg2[%c0_39, %c0_40, %c13, %c0_41] : memref<1x4x16x16xf32, #tpu.memory_space<vmem>>, vector<1x4x1x16xf32>
    %39 = vector.shape_cast %38 : vector<1x4x1x16xf32> to vector<1x4x16xf32>
    %40 = arith.maximumf %37, %39 : vector<1x4x16xf32>
    %c0_42 = arith.constant 0 : index
    %c0_43 = arith.constant 0 : index
    %c14 = arith.constant 14 : index
    %c0_44 = arith.constant 0 : index
    %41 = vector.load %arg2[%c0_42, %c0_43, %c14, %c0_44] : memref<1x4x16x16xf32, #tpu.memory_space<vmem>>, vector<1x4x1x16xf32>
    %42 = vector.shape_cast %41 : vector<1x4x1x16xf32> to vector<1x4x16xf32>
    %43 = arith.maximumf %40, %42 : vector<1x4x16xf32>
    %c0_45 = arith.constant 0 : index
    %c0_46 = arith.constant 0 : index
    %c15 = arith.constant 15 : index
    %c0_47 = arith.constant 0 : index
    %44 = vector.load %arg2[%c0_45, %c0_46, %c15, %c0_47] : memref<1x4x16x16xf32, #tpu.memory_space<vmem>>, vector<1x4x1x16xf32>
    %45 = vector.shape_cast %44 : vector<1x4x1x16xf32> to vector<1x4x16xf32>
    %46 = arith.maximumf %43, %45 : vector<1x4x16xf32>
    %cst = arith.constant dense<0xFF800000> : vector<1x4xf32>
    %47 = vector.multi_reduction <maximumf>, %46, %cst [2] : vector<1x4x16xf32> to vector<1x4xf32>
    %48 = vector.shape_cast %47 : vector<1x4xf32> to vector<1x4x1xf32>
    %c0_48 = arith.constant 0 : index
    %c0_49 = arith.constant 0 : index
    %c0_50 = arith.constant 0 : index
    %c0_51 = arith.constant 0 : index
    %49 = vector.load %arg2[%c0_48, %c0_49, %c0_50, %c0_51] : memref<1x4x16x16xf32, #tpu.memory_space<vmem>>, vector<1x4x1x16xf32>
    %50 = vector.shape_cast %49 : vector<1x4x1x16xf32> to vector<1x4x16xf32>
    %c0_52 = arith.constant 0 : index
    %c0_53 = arith.constant 0 : index
    %c1_54 = arith.constant 1 : index
    %c0_55 = arith.constant 0 : index
    %51 = vector.load %arg2[%c0_52, %c0_53, %c1_54, %c0_55] : memref<1x4x16x16xf32, #tpu.memory_space<vmem>>, vector<1x4x1x16xf32>
    %52 = vector.shape_cast %51 : vector<1x4x1x16xf32> to vector<1x4x16xf32>
    %53 = arith.maximumf %50, %52 : vector<1x4x16xf32>
    %c0_56 = arith.constant 0 : index
    %c0_57 = arith.constant 0 : index
    %c2_58 = arith.constant 2 : index
    %c0_59 = arith.constant 0 : index
    %54 = vector.load %arg2[%c0_56, %c0_57, %c2_58, %c0_59] : memref<1x4x16x16xf32, #tpu.memory_space<vmem>>, vector<1x4x1x16xf32>
    %55 = vector.shape_cast %54 : vector<1x4x1x16xf32> to vector<1x4x16xf32>
    %56 = arith.maximumf %53, %55 : vector<1x4x16xf32>
    %c0_60 = arith.constant 0 : index
    %c0_61 = arith.constant 0 : index
    %c3_62 = arith.constant 3 : index
    %c0_63 = arith.constant 0 : index
    %57 = vector.load %arg2[%c0_60, %c0_61, %c3_62, %c0_63] : memref<1x4x16x16xf32, #tpu.memory_space<vmem>>, vector<1x4x1x16xf32>
    %58 = vector.shape_cast %57 : vector<1x4x1x16xf32> to vector<1x4x16xf32>
    %59 = arith.maximumf %56, %58 : vector<1x4x16xf32>
    %c0_64 = arith.constant 0 : index
    %c0_65 = arith.constant 0 : index
    %c4_66 = arith.constant 4 : index
    %c0_67 = arith.constant 0 : index
    %60 = vector.load %arg2[%c0_64, %c0_65, %c4_66, %c0_67] : memref<1x4x16x16xf32, #tpu.memory_space<vmem>>, vector<1x4x1x16xf32>
    %61 = vector.shape_cast %60 : vector<1x4x1x16xf32> to vector<1x4x16xf32>
    %62 = arith.maximumf %59, %61 : vector<1x4x16xf32>
    %c0_68 = arith.constant 0 : index
    %c0_69 = arith.constant 0 : index
    %c5_70 = arith.constant 5 : index
    %c0_71 = arith.constant 0 : index
    %63 = vector.load %arg2[%c0_68, %c0_69, %c5_70, %c0_71] : memref<1x4x16x16xf32, #tpu.memory_space<vmem>>, vector<1x4x1x16xf32>
    %64 = vector.shape_cast %63 : vector<1x4x1x16xf32> to vector<1x4x16xf32>
    %65 = arith.maximumf %62, %64 : vector<1x4x16xf32>
    %c0_72 = arith.constant 0 : index
    %c0_73 = arith.constant 0 : index
    %c6_74 = arith.constant 6 : index
    %c0_75 = arith.constant 0 : index
    %66 = vector.load %arg2[%c0_72, %c0_73, %c6_74, %c0_75] : memref<1x4x16x16xf32, #tpu.memory_space<vmem>>, vector<1x4x1x16xf32>
    %67 = vector.shape_cast %66 : vector<1x4x1x16xf32> to vector<1x4x16xf32>
    %68 = arith.maximumf %65, %67 : vector<1x4x16xf32>
    %c0_76 = arith.constant 0 : index
    %c0_77 = arith.constant 0 : index
    %c7_78 = arith.constant 7 : index
    %c0_79 = arith.constant 0 : index
    %69 = vector.load %arg2[%c0_76, %c0_77, %c7_78, %c0_79] : memref<1x4x16x16xf32, #tpu.memory_space<vmem>>, vector<1x4x1x16xf32>
    %70 = vector.shape_cast %69 : vector<1x4x1x16xf32> to vector<1x4x16xf32>
    %71 = arith.maximumf %68, %70 : vector<1x4x16xf32>
    %72 = vector.extract_strided_slice %71 {offsets = [0, 0, 0], sizes = [1, 4, 8], strides = [1, 1, 1]} : vector<1x4x16xf32> to vector<1x4x8xf32>
    %cst_80 = arith.constant dense<0xFF800000> : vector<1x4xf32>
    %73 = vector.multi_reduction <maximumf>, %72, %cst_80 [2] : vector<1x4x8xf32> to vector<1x4xf32>
    %74 = vector.shape_cast %73 : vector<1x4xf32> to vector<1x4x1xf32>
    %75 = vector.extract_strided_slice %71 {offsets = [0, 0, 8], sizes = [1, 4, 8], strides = [1, 1, 1]} : vector<1x4x16xf32> to vector<1x4x8xf32>
    %cst_81 = arith.constant dense<0xFF800000> : vector<1x4xf32>
    %76 = vector.multi_reduction <maximumf>, %75, %cst_81 [2] : vector<1x4x8xf32> to vector<1x4xf32>
    %77 = vector.shape_cast %76 : vector<1x4xf32> to vector<1x4x1xf32>
    %c0_82 = arith.constant 0 : index
    %c0_83 = arith.constant 0 : index
    %c8_84 = arith.constant 8 : index
    %c0_85 = arith.constant 0 : index
    %78 = vector.load %arg2[%c0_82, %c0_83, %c8_84, %c0_85] : memref<1x4x16x16xf32, #tpu.memory_space<vmem>>, vector<1x4x1x16xf32>
    %79 = vector.shape_cast %78 : vector<1x4x1x16xf32> to vector<1x4x16xf32>
    %c0_86 = arith.constant 0 : index
    %c0_87 = arith.constant 0 : index
    %c9_88 = arith.constant 9 : index
    %c0_89 = arith.constant 0 : index
    %80 = vector.load %arg2[%c0_86, %c0_87, %c9_88, %c0_89] : memref<1x4x16x16xf32, #tpu.memory_space<vmem>>, vector<1x4x1x16xf32>
    %81 = vector.shape_cast %80 : vector<1x4x1x16xf32> to vector<1x4x16xf32>
    %82 = arith.maximumf %79, %81 : vector<1x4x16xf32>
    %c0_90 = arith.constant 0 : index
    %c0_91 = arith.constant 0 : index
    %c10_92 = arith.constant 10 : index
    %c0_93 = arith.constant 0 : index
    %83 = vector.load %arg2[%c0_90, %c0_91, %c10_92, %c0_93] : memref<1x4x16x16xf32, #tpu.memory_space<vmem>>, vector<1x4x1x16xf32>
    %84 = vector.shape_cast %83 : vector<1x4x1x16xf32> to vector<1x4x16xf32>
    %85 = arith.maximumf %82, %84 : vector<1x4x16xf32>
    %c0_94 = arith.constant 0 : index
    %c0_95 = arith.constant 0 : index
    %c11_96 = arith.constant 11 : index
    %c0_97 = arith.constant 0 : index
    %86 = vector.load %arg2[%c0_94, %c0_95, %c11_96, %c0_97] : memref<1x4x16x16xf32, #tpu.memory_space<vmem>>, vector<1x4x1x16xf32>
    %87 = vector.shape_cast %86 : vector<1x4x1x16xf32> to vector<1x4x16xf32>
    %88 = arith.maximumf %85, %87 : vector<1x4x16xf32>
    %c0_98 = arith.constant 0 : index
    %c0_99 = arith.constant 0 : index
    %c12_100 = arith.constant 12 : index
    %c0_101 = arith.constant 0 : index
    %89 = vector.load %arg2[%c0_98, %c0_99, %c12_100, %c0_101] : memref<1x4x16x16xf32, #tpu.memory_space<vmem>>, vector<1x4x1x16xf32>
    %90 = vector.shape_cast %89 : vector<1x4x1x16xf32> to vector<1x4x16xf32>
    %91 = arith.maximumf %88, %90 : vector<1x4x16xf32>
    %c0_102 = arith.constant 0 : index
    %c0_103 = arith.constant 0 : index
    %c13_104 = arith.constant 13 : index
    %c0_105 = arith.constant 0 : index
    %92 = vector.load %arg2[%c0_102, %c0_103, %c13_104, %c0_105] : memref<1x4x16x16xf32, #tpu.memory_space<vmem>>, vector<1x4x1x16xf32>
    %93 = vector.shape_cast %92 : vector<1x4x1x16xf32> to vector<1x4x16xf32>
    %94 = arith.maximumf %91, %93 : vector<1x4x16xf32>
    %c0_106 = arith.constant 0 : index
    %c0_107 = arith.constant 0 : index
    %c14_108 = arith.constant 14 : index
    %c0_109 = arith.constant 0 : index
    %95 = vector.load %arg2[%c0_106, %c0_107, %c14_108, %c0_109] : memref<1x4x16x16xf32, #tpu.memory_space<vmem>>, vector<1x4x1x16xf32>
    %96 = vector.shape_cast %95 : vector<1x4x1x16xf32> to vector<1x4x16xf32>
    %97 = arith.maximumf %94, %96 : vector<1x4x16xf32>
    %c0_110 = arith.constant 0 : index
    %c0_111 = arith.constant 0 : index
    %c15_112 = arith.constant 15 : index
    %c0_113 = arith.constant 0 : index
    %98 = vector.load %arg2[%c0_110, %c0_111, %c15_112, %c0_113] : memref<1x4x16x16xf32, #tpu.memory_space<vmem>>, vector<1x4x1x16xf32>
    %99 = vector.shape_cast %98 : vector<1x4x1x16xf32> to vector<1x4x16xf32>
    %100 = arith.maximumf %97, %99 : vector<1x4x16xf32>
    %101 = vector.extract_strided_slice %100 {offsets = [0, 0, 0], sizes = [1, 4, 8], strides = [1, 1, 1]} : vector<1x4x16xf32> to vector<1x4x8xf32>
    %cst_114 = arith.constant dense<0xFF800000> : vector<1x4xf32>
    %102 = vector.multi_reduction <maximumf>, %101, %cst_114 [2] : vector<1x4x8xf32> to vector<1x4xf32>
    %103 = vector.shape_cast %102 : vector<1x4xf32> to vector<1x4x1xf32>
    %104 = vector.extract_strided_slice %100 {offsets = [0, 0, 8], sizes = [1, 4, 8], strides = [1, 1, 1]} : vector<1x4x16xf32> to vector<1x4x8xf32>
    %cst_115 = arith.constant dense<0xFF800000> : vector<1x4xf32>
    %105 = vector.multi_reduction <maximumf>, %104, %cst_115 [2] : vector<1x4x8xf32> to vector<1x4xf32>
    %106 = vector.shape_cast %105 : vector<1x4xf32> to vector<1x4x1xf32>
    %c0_116 = arith.constant 0 : index
    %c0_117 = arith.constant 0 : index
    %c0_118 = arith.constant 0 : index
    %c0_119 = arith.constant 0 : index
    %107 = vector.load %arg2[%c0_116, %c0_117, %c0_118, %c0_119] : memref<1x4x16x16xf32, #tpu.memory_space<vmem>>, vector<1x4x1x16xf32>
    %108 = vector.shape_cast %107 : vector<1x4x1x16xf32> to vector<1x4x16xf32>
    %c0_120 = arith.constant 0 : index
    %c0_121 = arith.constant 0 : index
    %c1_122 = arith.constant 1 : index
    %c0_123 = arith.constant 0 : index
    %109 = vector.load %arg2[%c0_120, %c0_121, %c1_122, %c0_123] : memref<1x4x16x16xf32, #tpu.memory_space<vmem>>, vector<1x4x1x16xf32>
    %110 = vector.shape_cast %109 : vector<1x4x1x16xf32> to vector<1x4x16xf32>
    %111 = arith.maximumf %108, %110 : vector<1x4x16xf32>
    %c0_124 = arith.constant 0 : index
    %c0_125 = arith.constant 0 : index
    %c2_126 = arith.constant 2 : index
    %c0_127 = arith.constant 0 : index
    %112 = vector.load %arg2[%c0_124, %c0_125, %c2_126, %c0_127] : memref<1x4x16x16xf32, #tpu.memory_space<vmem>>, vector<1x4x1x16xf32>
    %113 = vector.shape_cast %112 : vector<1x4x1x16xf32> to vector<1x4x16xf32>
    %114 = arith.maximumf %111, %113 : vector<1x4x16xf32>
    %c0_128 = arith.constant 0 : index
    %c0_129 = arith.constant 0 : index
    %c3_130 = arith.constant 3 : index
    %c0_131 = arith.constant 0 : index
    %115 = vector.load %arg2[%c0_128, %c0_129, %c3_130, %c0_131] : memref<1x4x16x16xf32, #tpu.memory_space<vmem>>, vector<1x4x1x16xf32>
    %116 = vector.shape_cast %115 : vector<1x4x1x16xf32> to vector<1x4x16xf32>
    %117 = arith.maximumf %114, %116 : vector<1x4x16xf32>
    %c0_132 = arith.constant 0 : index
    %c0_133 = arith.constant 0 : index
    %c4_134 = arith.constant 4 : index
    %c0_135 = arith.constant 0 : index
    %118 = vector.load %arg2[%c0_132, %c0_133, %c4_134, %c0_135] : memref<1x4x16x16xf32, #tpu.memory_space<vmem>>, vector<1x4x1x16xf32>
    %119 = vector.shape_cast %118 : vector<1x4x1x16xf32> to vector<1x4x16xf32>
    %120 = arith.maximumf %117, %119 : vector<1x4x16xf32>
    %c0_136 = arith.constant 0 : index
    %c0_137 = arith.constant 0 : index
    %c5_138 = arith.constant 5 : index
    %c0_139 = arith.constant 0 : index
    %121 = vector.load %arg2[%c0_136, %c0_137, %c5_138, %c0_139] : memref<1x4x16x16xf32, #tpu.memory_space<vmem>>, vector<1x4x1x16xf32>
    %122 = vector.shape_cast %121 : vector<1x4x1x16xf32> to vector<1x4x16xf32>
    %123 = arith.maximumf %120, %122 : vector<1x4x16xf32>
    %124 = vector.extract_strided_slice %123 {offsets = [0, 0, 0], sizes = [1, 4, 6], strides = [1, 1, 1]} : vector<1x4x16xf32> to vector<1x4x6xf32>
    %cst_140 = arith.constant dense<0xFF800000> : vector<1x4xf32>
    %125 = vector.multi_reduction <maximumf>, %124, %cst_140 [2] : vector<1x4x6xf32> to vector<1x4xf32>
    %126 = vector.shape_cast %125 : vector<1x4xf32> to vector<1x4x1xf32>
    %127 = vector.extract_strided_slice %123 {offsets = [0, 0, 5], sizes = [1, 4, 6], strides = [1, 1, 1]} : vector<1x4x16xf32> to vector<1x4x6xf32>
    %cst_141 = arith.constant dense<0xFF800000> : vector<1x4xf32>
    %128 = vector.multi_reduction <maximumf>, %127, %cst_141 [2] : vector<1x4x6xf32> to vector<1x4xf32>
    %129 = vector.shape_cast %128 : vector<1x4xf32> to vector<1x4x1xf32>
    %130 = vector.extract_strided_slice %123 {offsets = [0, 0, 10], sizes = [1, 4, 6], strides = [1, 1, 1]} : vector<1x4x16xf32> to vector<1x4x6xf32>
    %cst_142 = arith.constant dense<0xFF800000> : vector<1x4xf32>
    %131 = vector.multi_reduction <maximumf>, %130, %cst_142 [2] : vector<1x4x6xf32> to vector<1x4xf32>
    %132 = vector.shape_cast %131 : vector<1x4xf32> to vector<1x4x1xf32>
    %c0_143 = arith.constant 0 : index
    %c0_144 = arith.constant 0 : index
    %c5_145 = arith.constant 5 : index
    %c0_146 = arith.constant 0 : index
    %133 = vector.load %arg2[%c0_143, %c0_144, %c5_145, %c0_146] : memref<1x4x16x16xf32, #tpu.memory_space<vmem>>, vector<1x4x1x16xf32>
    %134 = vector.shape_cast %133 : vector<1x4x1x16xf32> to vector<1x4x16xf32>
    %c0_147 = arith.constant 0 : index
    %c0_148 = arith.constant 0 : index
    %c6_149 = arith.constant 6 : index
    %c0_150 = arith.constant 0 : index
    %135 = vector.load %arg2[%c0_147, %c0_148, %c6_149, %c0_150] : memref<1x4x16x16xf32, #tpu.memory_space<vmem>>, vector<1x4x1x16xf32>
    %136 = vector.shape_cast %135 : vector<1x4x1x16xf32> to vector<1x4x16xf32>
    %137 = arith.maximumf %134, %136 : vector<1x4x16xf32>
    %c0_151 = arith.constant 0 : index
    %c0_152 = arith.constant 0 : index
    %c7_153 = arith.constant 7 : index
    %c0_154 = arith.constant 0 : index
    %138 = vector.load %arg2[%c0_151, %c0_152, %c7_153, %c0_154] : memref<1x4x16x16xf32, #tpu.memory_space<vmem>>, vector<1x4x1x16xf32>
    %139 = vector.shape_cast %138 : vector<1x4x1x16xf32> to vector<1x4x16xf32>
    %140 = arith.maximumf %137, %139 : vector<1x4x16xf32>
    %c0_155 = arith.constant 0 : index
    %c0_156 = arith.constant 0 : index
    %c8_157 = arith.constant 8 : index
    %c0_158 = arith.constant 0 : index
    %141 = vector.load %arg2[%c0_155, %c0_156, %c8_157, %c0_158] : memref<1x4x16x16xf32, #tpu.memory_space<vmem>>, vector<1x4x1x16xf32>
    %142 = vector.shape_cast %141 : vector<1x4x1x16xf32> to vector<1x4x16xf32>
    %143 = arith.maximumf %140, %142 : vector<1x4x16xf32>
    %c0_159 = arith.constant 0 : index
    %c0_160 = arith.constant 0 : index
    %c9_161 = arith.constant 9 : index
    %c0_162 = arith.constant 0 : index
    %144 = vector.load %arg2[%c0_159, %c0_160, %c9_161, %c0_162] : memref<1x4x16x16xf32, #tpu.memory_space<vmem>>, vector<1x4x1x16xf32>
    %145 = vector.shape_cast %144 : vector<1x4x1x16xf32> to vector<1x4x16xf32>
    %146 = arith.maximumf %143, %145 : vector<1x4x16xf32>
    %c0_163 = arith.constant 0 : index
    %c0_164 = arith.constant 0 : index
    %c10_165 = arith.constant 10 : index
    %c0_166 = arith.constant 0 : index
    %147 = vector.load %arg2[%c0_163, %c0_164, %c10_165, %c0_166] : memref<1x4x16x16xf32, #tpu.memory_space<vmem>>, vector<1x4x1x16xf32>
    %148 = vector.shape_cast %147 : vector<1x4x1x16xf32> to vector<1x4x16xf32>
    %149 = arith.maximumf %146, %148 : vector<1x4x16xf32>
    %150 = vector.extract_strided_slice %149 {offsets = [0, 0, 0], sizes = [1, 4, 6], strides = [1, 1, 1]} : vector<1x4x16xf32> to vector<1x4x6xf32>
    %cst_167 = arith.constant dense<0xFF800000> : vector<1x4xf32>
    %151 = vector.multi_reduction <maximumf>, %150, %cst_167 [2] : vector<1x4x6xf32> to vector<1x4xf32>
    %152 = vector.shape_cast %151 : vector<1x4xf32> to vector<1x4x1xf32>
    %153 = vector.extract_strided_slice %149 {offsets = [0, 0, 5], sizes = [1, 4, 6], strides = [1, 1, 1]} : vector<1x4x16xf32> to vector<1x4x6xf32>
    %cst_168 = arith.constant dense<0xFF800000> : vector<1x4xf32>
    %154 = vector.multi_reduction <maximumf>, %153, %cst_168 [2] : vector<1x4x6xf32> to vector<1x4xf32>
    %155 = vector.shape_cast %154 : vector<1x4xf32> to vector<1x4x1xf32>
    %156 = vector.extract_strided_slice %149 {offsets = [0, 0, 10], sizes = [1, 4, 6], strides = [1, 1, 1]} : vector<1x4x16xf32> to vector<1x4x6xf32>
    %cst_169 = arith.constant dense<0xFF800000> : vector<1x4xf32>
    %157 = vector.multi_reduction <maximumf>, %156, %cst_169 [2] : vector<1x4x6xf32> to vector<1x4xf32>
    %158 = vector.shape_cast %157 : vector<1x4xf32> to vector<1x4x1xf32>
    %c0_170 = arith.constant 0 : index
    %c0_171 = arith.constant 0 : index
    %c10_172 = arith.constant 10 : index
    %c0_173 = arith.constant 0 : index
    %159 = vector.load %arg2[%c0_170, %c0_171, %c10_172, %c0_173] : memref<1x4x16x16xf32, #tpu.memory_space<vmem>>, vector<1x4x1x16xf32>
    %160 = vector.shape_cast %159 : vector<1x4x1x16xf32> to vector<1x4x16xf32>
    %c0_174 = arith.constant 0 : index
    %c0_175 = arith.constant 0 : index
    %c11_176 = arith.constant 11 : index
    %c0_177 = arith.constant 0 : index
    %161 = vector.load %arg2[%c0_174, %c0_175, %c11_176, %c0_177] : memref<1x4x16x16xf32, #tpu.memory_space<vmem>>, vector<1x4x1x16xf32>
    %162 = vector.shape_cast %161 : vector<1x4x1x16xf32> to vector<1x4x16xf32>
    %163 = arith.maximumf %160, %162 : vector<1x4x16xf32>
    %c0_178 = arith.constant 0 : index
    %c0_179 = arith.constant 0 : index
    %c12_180 = arith.constant 12 : index
    %c0_181 = arith.constant 0 : index
    %164 = vector.load %arg2[%c0_178, %c0_179, %c12_180, %c0_181] : memref<1x4x16x16xf32, #tpu.memory_space<vmem>>, vector<1x4x1x16xf32>
    %165 = vector.shape_cast %164 : vector<1x4x1x16xf32> to vector<1x4x16xf32>
    %166 = arith.maximumf %163, %165 : vector<1x4x16xf32>
    %c0_182 = arith.constant 0 : index
    %c0_183 = arith.constant 0 : index
    %c13_184 = arith.constant 13 : index
    %c0_185 = arith.constant 0 : index
    %167 = vector.load %arg2[%c0_182, %c0_183, %c13_184, %c0_185] : memref<1x4x16x16xf32, #tpu.memory_space<vmem>>, vector<1x4x1x16xf32>
    %168 = vector.shape_cast %167 : vector<1x4x1x16xf32> to vector<1x4x16xf32>
    %169 = arith.maximumf %166, %168 : vector<1x4x16xf32>
    %c0_186 = arith.constant 0 : index
    %c0_187 = arith.constant 0 : index
    %c14_188 = arith.constant 14 : index
    %c0_189 = arith.constant 0 : index
    %170 = vector.load %arg2[%c0_186, %c0_187, %c14_188, %c0_189] : memref<1x4x16x16xf32, #tpu.memory_space<vmem>>, vector<1x4x1x16xf32>
    %171 = vector.shape_cast %170 : vector<1x4x1x16xf32> to vector<1x4x16xf32>
    %172 = arith.maximumf %169, %171 : vector<1x4x16xf32>
    %c0_190 = arith.constant 0 : index
    %c0_191 = arith.constant 0 : index
    %c15_192 = arith.constant 15 : index
    %c0_193 = arith.constant 0 : index
    %173 = vector.load %arg2[%c0_190, %c0_191, %c15_192, %c0_193] : memref<1x4x16x16xf32, #tpu.memory_space<vmem>>, vector<1x4x1x16xf32>
    %174 = vector.shape_cast %173 : vector<1x4x1x16xf32> to vector<1x4x16xf32>
    %175 = arith.maximumf %172, %174 : vector<1x4x16xf32>
    %176 = vector.extract_strided_slice %175 {offsets = [0, 0, 0], sizes = [1, 4, 6], strides = [1, 1, 1]} : vector<1x4x16xf32> to vector<1x4x6xf32>
    %cst_194 = arith.constant dense<0xFF800000> : vector<1x4xf32>
    %177 = vector.multi_reduction <maximumf>, %176, %cst_194 [2] : vector<1x4x6xf32> to vector<1x4xf32>
    %178 = vector.shape_cast %177 : vector<1x4xf32> to vector<1x4x1xf32>
    %179 = vector.extract_strided_slice %175 {offsets = [0, 0, 5], sizes = [1, 4, 6], strides = [1, 1, 1]} : vector<1x4x16xf32> to vector<1x4x6xf32>
    %cst_195 = arith.constant dense<0xFF800000> : vector<1x4xf32>
    %180 = vector.multi_reduction <maximumf>, %179, %cst_195 [2] : vector<1x4x6xf32> to vector<1x4xf32>
    %181 = vector.shape_cast %180 : vector<1x4xf32> to vector<1x4x1xf32>
    %182 = vector.extract_strided_slice %175 {offsets = [0, 0, 10], sizes = [1, 4, 6], strides = [1, 1, 1]} : vector<1x4x16xf32> to vector<1x4x6xf32>
    %cst_196 = arith.constant dense<0xFF800000> : vector<1x4xf32>
    %183 = vector.multi_reduction <maximumf>, %182, %cst_196 [2] : vector<1x4x6xf32> to vector<1x4xf32>
    %184 = vector.shape_cast %183 : vector<1x4xf32> to vector<1x4x1xf32>
    %185 = tpu.concatenate %48, %74, %77, %103, %106, %126, %129, %132, %152, %155, %158, %178, %181, %184 in 2 : vector<1x4x1xf32>, vector<1x4x1xf32>, vector<1x4x1xf32>, vector<1x4x1xf32>, vector<1x4x1xf32>, vector<1x4x1xf32>, vector<1x4x1xf32>, vector<1x4x1xf32>, vector<1x4x1xf32>, vector<1x4x1xf32>, vector<1x4x1xf32>, vector<1x4x1xf32>, vector<1x4x1xf32>, vector<1x4x1xf32> -> vector<1x4x14xf32>
    %c0_197 = arith.constant 0 : index
    %c0_198 = arith.constant 0 : index
    %c0_199 = arith.constant 0 : index
    %186 = vector.load %arg3[%c0_197, %c0_198, %c0_199] : memref<1x4x14xf32, #tpu.memory_space<vmem>>, vector<1x4x14xf32>
    tpu.vector_store %arg3[%c0_197, %c0_198, %c0_199], %185 {strides = array<i32>} : memref<1x4x14xf32, #tpu.memory_space<vmem>>, vector<1x4x14xf32>,
    return
  }
  func.func @transform_0(%arg0: i32, %arg1: i32) -> (i32, i32, i32, i32) {
    %c0_i32 = arith.constant 0 : i32
    %c0_i32_0 = arith.constant 0 : i32
    %c0_i32_1 = arith.constant 0 : i32
    return %arg0, %arg1, %c0_i32, %c0_i32_0 : i32, i32, i32, i32
  }
  func.func @transform_1(%arg0: i32, %arg1: i32) -> (i32, i32, i32) {
    %c0_i32 = arith.constant 0 : i32
    %c0_i32_0 = arith.constant 0 : i32
    return %arg0, %arg1, %c0_i32 : i32, i32, i32
  }
}

</mosaic_0001>

<llo_original>
// kernel: tpu_custom_call.1
$region0: #{tpu_custom_call.1}
  #allocation0 [shape = 'u32[]', space=smem, size = 0x4, offset = 0x4, fixed_abs, tag = 'smem constant byte address 0x4 - core index']
  #allocation1 [shape = 'u32[144,128]{1,0:T(1,128)}', space=vmem, size = 0x12000, scoped, tag = 'internal scratch']
  %s0 = inlined_call_operand.hbm [shape: f32[2,4,16,16], index: 0, kind: input, shape index: {}]
  %s1 = inlined_call_operand.hbm [shape: f32[2,4,14], index: 1, kind: output, shape index: {}]
  %s2 = sld [smem:[#allocation0]]
  $region41: #{tpu_custom_call.1} parent=0
    _
  %s4 = ssub.s32 1, %s2
  %s5 = scalar_select 0, %s4, %s2
  $region1: #{tpu_custom_call.1} parent=0
    #allocation2 [shape = 'u8[65536]{0}', space=vmem, size = 0x10000, scoped, tag = 'input window, operand 0']
    #allocation3 [shape = 's32[2]{0}', space=sflag, size = 0x8, scoped, tag = 'scoped memory for tpu_custom_call.1']
    #allocation4 [shape = 's32[2]{0}', space=sflag, size = 0x8, scoped, tag = 'scoped memory for tpu_custom_call.1']
    #allocation5 [shape = 'u8[4096]{0}', space=vmem, size = 0x1000, scoped, tag = 'output window, operand 0']
    %6 = vsyncpa [#allocation3], 0
    %s7 = scalar_lea.sflag [#allocation3], 1
    %8 = vsyncpa %s7, 0
    %9 = vsyncpa [#allocation4], 0
    %s10 = scalar_lea.sflag [#allocation4], 1
    %11 = vsyncpa %s10, 0
    loop: start=0, step=1, limit=4
    $region2: #{tpu_custom_call.1} parent=1 // loop_pre_header
      _
    $region3: #{tpu_custom_call.1} parent=1 // loop_header
      %s13 = sphi 0, %s17
      %p14 = scmp.ge.s32.totalorder %s13, 4
      %s20 = sphi 0, %s32
      %s21 = sphi 0, %s28
      %s22 = sphi 0, %s20
      %s23 = sphi 0, %s21
      %s24 = sphi 0, %s22
      %s25 = sphi 0, %s23
      %s37 = sphi 0, %s39
      %s40 = sphi 0, %s37
      %s41 = sphi 0, %s40
      %s57 = sphi 0, %s41
      %s65 = sphi 0, %s67
      %s68 = sphi 0, %s65
      %s69 = sphi 0, %s68
      %s85 = sphi 0, %s69
    $region4: #{tpu_custom_call.1} parent=1 // loop_header_branch
      %16 = sbr.rel (%p14) target = $region8
    $region5: #{tpu_custom_call.1} parent=1 // loop_body
      %s18 = ssub.s32 %s13, 1
      %s19 = ssub.s32 %s13, 2
      %s26 = sadd.s32 1, %s21
      %p27 = scmp.ge.s32.totalorder %s26, 1
      %s28 = scalar_select %p27, 0, %s26
      %s29 = sadd.s32 1, %s20
      %s30 = scalar_select %p27, %s29, %s20
      %p31 = scmp.ge.s32.totalorder %s30, 2
      %s32 = scalar_select %p31, 0, %s30
      %s33 = ssub.s32 %s20, %s32
      %s34 = ssub.s32 %s21, %s28
      %s35 = sor.u32 %s33, %s34
      %p36 = scmp.eq.s32.totalorder %s35, 0
      %s38 = sadd.s32 %s37, 1
      %s39 = scalar_select %p36, %s37, %s38
      %p42 = pneg %p36
      %p43 = scmp.eq.s32.totalorder %s13, 1
      %p44 = por %p42, %p43
      %p45 = scmp.ne.s32.totalorder %s37, %s40
      %p46 = scmp.eq.s32.totalorder %s13, 0
      %p47 = por %p45, %p46
      %p48 = scmp.ne.s32.totalorder %s37, %s40
      %p49 = scmp.eq.s32.totalorder %s18, 1
      %p50 = por %p48, %p49
      %p51 = scmp.ne.s32.totalorder %s40, %s41
      %p52 = scmp.eq.s32.totalorder %s18, 0
      %p53 = por %p51, %p52
      %p54 = scmp.ne.s32.totalorder %s40, %s41
      %p55 = scmp.eq.s32.totalorder %s19, 1
      %p56 = por %p54, %p55
      %p58 = scmp.ne.s32.totalorder %s41, %s57
      %p59 = scmp.eq.s32.totalorder %s19, 0
      %p60 = por %p58, %p59
      %s61 = ssub.s32 %s20, %s32
      %s62 = ssub.s32 %s21, %s28
      %s63 = sor.u32 %s61, %s62
      %p64 = scmp.eq.s32.totalorder %s63, 0
      %s66 = sadd.s32 %s65, 1
      %s67 = scalar_select %p64, %s65, %s66
      %p70 = pneg %p64
      %p71 = scmp.eq.s32.totalorder %s13, 1
      %p72 = por %p70, %p71
      %p73 = scmp.ne.s32.totalorder %s65, %s68
      %p74 = scmp.eq.s32.totalorder %s13, 0
      %p75 = por %p73, %p74
      %p76 = scmp.ne.s32.totalorder %s65, %s68
      %p77 = scmp.eq.s32.totalorder %s18, 1
      %p78 = por %p76, %p77
      %p79 = scmp.ne.s32.totalorder %s68, %s69
      %p80 = scmp.eq.s32.totalorder %s18, 0
      %p81 = por %p79, %p80
      %p82 = scmp.ne.s32.totalorder %s68, %s69
      %p83 = scmp.eq.s32.totalorder %s19, 1
      %p84 = por %p82, %p83
      %p86 = scmp.ne.s32.totalorder %s69, %s85
      %p87 = scmp.eq.s32.totalorder %s19, 0
      %p88 = por %p86, %p87
      %p89 = scmp.le.s32.totalorder 1, %s13
      %p90 = scmp.lt.s32.totalorder %s13, 3
      %p91 = pnand %p89, %p90
      %p92 = pneg %p91
      // Predicated region
      $region9: #{tpu_custom_call.1} parent=5 // pred_check
        _
      $region10: #{tpu_custom_call.1} parent=5 // pred_check_branch
        %94 = sbr.rel (%p91) target = $region12
      $region11: #{tpu_custom_call.1} parent=5 // pred_region
        %s95 = ssub.s32 %s13, 1
      $region12: #{tpu_custom_call.1} parent=5 // pred_fallthru
        _
      %p96 = scmp.lt.s32.totalorder %s13, 2
      // Predicated region
      $region13: #{tpu_custom_call.1} parent=5 // pred_check
        %p97 = pneg %p96
      $region14: #{tpu_custom_call.1} parent=5 // pred_check_branch
        %99 = sbr.rel (%p97) target = $region16
      $region15: #{tpu_custom_call.1} parent=5 // pred_region
        // Predicated region
        $region17: #{tpu_custom_call.1} parent=15 // pred_check
          %p100 = pneg %p47
        $region18: #{tpu_custom_call.1} parent=15 // pred_check_branch
          %102 = sbr.rel (%p100) target = $region20
        $region19: #{tpu_custom_call.1} parent=15 // pred_region
          %s103 = sand.u32 %s37, 1
          %s104 = scalar_lea.sflag [#allocation3], %s103
          %s105 = sand.u32 %s37, 1
          %s106 = smul.addr %s105, 64
          %s107 = scalar_lea.vmem [#allocation2], %s106
          %s108 = smul.u32 4, %s21
          %s110 = ssub.s32 1024, 1024
          %111 = vsyncadd %s104, %s110
          %s112 = smul.addr %s108, 2
          %s113 = smul.addr %s20, 8
          %s114 = sadd.s32 %s112, %s113
          %s115 = smul.addr %s114, 128
          %s116 = scalar_lea.hbm %s0, %s115
          %s117 = sshll.u32 %s107, 4
          %s118 = int_to_ptr.vmem [resolvable:$true] %s117
          %123 = dma.hbm_to_vmem [thread:$0]  %s116, 1024, %s118, %s104, 128, 128, 8
        $region20: #{tpu_custom_call.1} parent=15 // pred_fallthru
          _
      $region16: #{tpu_custom_call.1} parent=5 // pred_fallthru
        _
      %p124 = scmp.le.s32.totalorder 1, %s13
      %p125 = scmp.lt.s32.totalorder %s13, 3
      %p126 = pnand %p124, %p125
      %p127 = pneg %p126
      // Predicated region
      $region21: #{tpu_custom_call.1} parent=5 // pred_check
        _
      $region22: #{tpu_custom_call.1} parent=5 // pred_check_branch
        %129 = sbr.rel (%p126) target = $region24
      $region23: #{tpu_custom_call.1} parent=5 // pred_region
        %s130 = ssub.s32 %s13, 1
        %s131 = sand.u32 %s40, 1
        %s132 = scalar_lea.sflag [#allocation3], %s131
        %s133 = sand.u32 %s40, 1
        %s134 = smul.addr %s133, 64
        %s135 = scalar_lea.vmem [#allocation2], %s134
        // Predicated region
        $region25: #{tpu_custom_call.1} parent=23 // pred_check
          %p136 = pneg %p53
        $region26: #{tpu_custom_call.1} parent=23 // pred_check_branch
          %138 = sbr.rel (%p136) target = $region28
        $region27: #{tpu_custom_call.1} parent=23 // pred_region
          %139 = dma.done %s132, 1024
        $region28: #{tpu_custom_call.1} parent=23 // pred_fallthru
          _
        %s140 = sand.u32 %s40, 1
        %s141 = scalar_lea.sflag [#allocation3], %s140
        %s142 = sand.u32 %s40, 1
        %s143 = smul.addr %s142, 64
        %s144 = scalar_lea.vmem [#allocation2], %s143
        %p145 = pneg %p53
        %p146 = pneg %p50
        %p147 = pneg %p81
        %p148 = pneg %p78
        %s149 = sand.u32 %s68, 1
        %s150 = scalar_lea.sflag [#allocation4], %s149
        %s151 = sand.u32 %s68, 1
        %s152 = smul.addr %s151, 4
        %s153 = scalar_lea.vmem [#allocation5], %s152
        %s154 = smul.u32 4, %s23
        %v155 = vld [vmem:[%s135] sm:$0x1]
        %v156 = vld [vmem:[%s135 + $0x10] sm:$0x1]
        %v157 = vld [vmem:[%s135 + $0x20] sm:$0x1]
        %v158 = vld [vmem:[%s135 + $0x30] sm:$0x1]
        %v159 = vld [vmem:[%s135 + $0x1] sm:$0x1]
        %v160 = vld [vmem:[%s135 + $0x11] sm:$0x1]
        %v161 = vld [vmem:[%s135 + $0x21] sm:$0x1]
        %v162 = vld [vmem:[%s135 + $0x31] sm:$0x1]
        %v163 = vmax.f32 %v155, %v159
        %v164 = vmax.f32 %v156, %v160
        %v165 = vmax.f32 %v157, %v161
        %v166 = vmax.f32 %v158, %v162
        %v167 = vld [vmem:[%s135 + $0x2] sm:$0x1]
        %v168 = vld [vmem:[%s135 + $0x12] sm:$0x1]
        %v169 = vld [vmem:[%s135 + $0x22] sm:$0x1]
        %v170 = vld [vmem:[%s135 + $0x32] sm:$0x1]
        %v171 = vmax.f32 %v163, %v167
        %v172 = vmax.f32 %v164, %v168
        %v173 = vmax.f32 %v165, %v169
        %v174 = vmax.f32 %v166, %v170
        %v175 = vld [vmem:[%s135 + $0x3] sm:$0x1]
        %v176 = vld [vmem:[%s135 + $0x13] sm:$0x1]
        %v177 = vld [vmem:[%s135 + $0x23] sm:$0x1]
        %v178 = vld [vmem:[%s135 + $0x33] sm:$0x1]
        %v179 = vmax.f32 %v171, %v175
        %v180 = vmax.f32 %v172, %v176
        %v181 = vmax.f32 %v173, %v177
        %v182 = vmax.f32 %v174, %v178
        %v183 = vld [vmem:[%s135 + $0x4] sm:$0x1]
        %v184 = vld [vmem:[%s135 + $0x14] sm:$0x1]
        %v185 = vld [vmem:[%s135 + $0x24] sm:$0x1]
        %v186 = vld [vmem:[%s135 + $0x34] sm:$0x1]
        %v187 = vmax.f32 %v179, %v183
        %v188 = vmax.f32 %v180, %v184
        %v189 = vmax.f32 %v181, %v185
        %v190 = vmax.f32 %v182, %v186
        %v191 = vld [vmem:[%s135 + $0x5] sm:$0x1]
        %v192 = vld [vmem:[%s135 + $0x15] sm:$0x1]
        %v193 = vld [vmem:[%s135 + $0x25] sm:$0x1]
        %v194 = vld [vmem:[%s135 + $0x35] sm:$0x1]
        %v195 = vmax.f32 %v187, %v191
        %v196 = vmax.f32 %v188, %v192
        %v197 = vmax.f32 %v189, %v193
        %v198 = vmax.f32 %v190, %v194
        %v199 = vld [vmem:[%s135 + $0x6] sm:$0x1]
        %v200 = vld [vmem:[%s135 + $0x16] sm:$0x1]
        %v201 = vld [vmem:[%s135 + $0x26] sm:$0x1]
        %v202 = vld [vmem:[%s135 + $0x36] sm:$0x1]
        %v203 = vmax.f32 %v195, %v199
        %v204 = vmax.f32 %v196, %v200
        %v205 = vmax.f32 %v197, %v201
        %v206 = vmax.f32 %v198, %v202
        %v207 = vld [vmem:[%s135 + $0x7] sm:$0x1]
        %v208 = vld [vmem:[%s135 + $0x17] sm:$0x1]
        %v209 = vld [vmem:[%s135 + $0x27] sm:$0x1]
        %v210 = vld [vmem:[%s135 + $0x37] sm:$0x1]
        %v211 = vmax.f32 %v203, %v207
        %v212 = vmax.f32 %v204, %v208
        %v213 = vmax.f32 %v205, %v209
        %v214 = vmax.f32 %v206, %v210
        %v215 = vld [vmem:[%s135 + $0x8] sm:$0x1]
        %v216 = vld [vmem:[%s135 + $0x18] sm:$0x1]
        %v217 = vld [vmem:[%s135 + $0x28] sm:$0x1]
        %v218 = vld [vmem:[%s135 + $0x38] sm:$0x1]
        %v219 = vmax.f32 %v211, %v215
        %v220 = vmax.f32 %v212, %v216
        %v221 = vmax.f32 %v213, %v217
        %v222 = vmax.f32 %v214, %v218
        %v223 = vld [vmem:[%s135 + $0x9] sm:$0x1]
        %v224 = vld [vmem:[%s135 + $0x19] sm:$0x1]
        %v225 = vld [vmem:[%s135 + $0x29] sm:$0x1]
        %v226 = vld [vmem:[%s135 + $0x39] sm:$0x1]
        %v227 = vmax.f32 %v219, %v223
        %v228 = vmax.f32 %v220, %v224
        %v229 = vmax.f32 %v221, %v225
        %v230 = vmax.f32 %v222, %v226
        %v231 = vld [vmem:[%s135 + $0xa] sm:$0x1]
        %v232 = vld [vmem:[%s135 + $0x1a] sm:$0x1]
        %v233 = vld [vmem:[%s135 + $0x2a] sm:$0x1]
        %v234 = vld [vmem:[%s135 + $0x3a] sm:$0x1]
        %v235 = vmax.f32 %v227, %v231
        %v236 = vmax.f32 %v228, %v232
        %v237 = vmax.f32 %v229, %v233
        %v238 = vmax.f32 %v230, %v234
        %v239 = vld [vmem:[%s135 + $0xb] sm:$0x1]
        %v240 = vld [vmem:[%s135 + $0x1b] sm:$0x1]
        %v241 = vld [vmem:[%s135 + $0x2b] sm:$0x1]
        %v242 = vld [vmem:[%s135 + $0x3b] sm:$0x1]
        %v243 = vmax.f32 %v235, %v239
        %v244 = vmax.f32 %v236, %v240
        %v245 = vmax.f32 %v237, %v241
        %v246 = vmax.f32 %v238, %v242
        %v247 = vld [vmem:[%s135 + $0xc] sm:$0x1]
        %v248 = vld [vmem:[%s135 + $0x1c] sm:$0x1]
        %v249 = vld [vmem:[%s135 + $0x2c] sm:$0x1]
        %v250 = vld [vmem:[%s135 + $0x3c] sm:$0x1]
        %v251 = vmax.f32 %v243, %v247
        %v252 = vmax.f32 %v244, %v248
        %v253 = vmax.f32 %v245, %v249
        %v254 = vmax.f32 %v246, %v250
        %v255 = vld [vmem:[%s135 + $0xd] sm:$0x1]
        %v256 = vld [vmem:[%s135 + $0x1d] sm:$0x1]
        %v257 = vld [vmem:[%s135 + $0x2d] sm:$0x1]
        %v258 = vld [vmem:[%s135 + $0x3d] sm:$0x1]
        %v259 = vmax.f32 %v251, %v255
        %v260 = vmax.f32 %v252, %v256
        %v261 = vmax.f32 %v253, %v257
        %v262 = vmax.f32 %v254, %v258
        %v263 = vld [vmem:[%s135 + $0xe] sm:$0x1]
        %v264 = vld [vmem:[%s135 + $0x1e] sm:$0x1]
        %v265 = vld [vmem:[%s135 + $0x2e] sm:$0x1]
        %v266 = vld [vmem:[%s135 + $0x3e] sm:$0x1]
        %v267 = vmax.f32 %v259, %v263
        %v268 = vmax.f32 %v260, %v264
        %v269 = vmax.f32 %v261, %v265
        %v270 = vmax.f32 %v262, %v266
        %v271 = vld [vmem:[%s135 + $0xf] sm:$0x1]
        %v272 = vld [vmem:[%s135 + $0x1f] sm:$0x1]
        %v273 = vld [vmem:[%s135 + $0x2f] sm:$0x1]
        %v274 = vld [vmem:[%s135 + $0x3f] sm:$0x1]
        %v275 = vmax.f32 %v267, %v271
        %v276 = vmax.f32 %v268, %v272
        %v277 = vmax.f32 %v269, %v273
        %v278 = vmax.f32 %v270, %v274
        %v283 = vrot.slane %v276, 7
        %vm284 = vcmask 1041409
        %v285 = vsel %vm284, %v283, %v275
        %v286 = vrot.slane %v277, 6
        %vm287 = vcmask 1042434
        %v288 = vsel %vm287, %v286, %v285
        %v289 = vrot.slane %v278, 5
        %vm290 = vcmask 1043459
        %v291 = vsel %vm290, %v289, %v288
        %vm293 = vcmask 125952
        %v294 = vsel %vm293, %v291, -inf
        %295 = vmax.xlane.f32.xlu0 %v294
        %v296 = vpop.xlane.xlu0 %295
        %v301 = vrot.slane %v212, 7
        %v302 = vsel %vm284, %v301, %v211
        %v303 = vrot.slane %v213, 6
        %v304 = vsel %vm287, %v303, %v302
        %v305 = vrot.slane %v214, 5
        %v306 = vsel %vm290, %v305, %v304
        %vm308 = vcmask 60416
        %v309 = vsel %vm308, %v306, -inf
        %310 = vmax.xlane.f32.xlu0 %v309
        %v311 = vpop.xlane.xlu0 %310
        %vm312 = vcmask 126016
        %v313 = vsel %vm312, %v306, -inf
        %314 = vmax.xlane.f32.xlu0 %v313
        %v315 = vpop.xlane.xlu0 %314
        %v316 = vmax.f32 %v215, %v223
        %v317 = vmax.f32 %v216, %v224
        %v318 = vmax.f32 %v217, %v225
        %v319 = vmax.f32 %v218, %v226
        %v320 = vmax.f32 %v316, %v231
        %v321 = vmax.f32 %v317, %v232
        %v322 = vmax.f32 %v318, %v233
        %v323 = vmax.f32 %v319, %v234
        %v324 = vmax.f32 %v320, %v239
        %v325 = vmax.f32 %v321, %v240
        %v326 = vmax.f32 %v322, %v241
        %v327 = vmax.f32 %v323, %v242
        %v328 = vmax.f32 %v324, %v247
        %v329 = vmax.f32 %v325, %v248
        %v330 = vmax.f32 %v326, %v249
        %v331 = vmax.f32 %v327, %v250
        %v332 = vmax.f32 %v328, %v255
        %v333 = vmax.f32 %v329, %v256
        %v334 = vmax.f32 %v330, %v257
        %v335 = vmax.f32 %v331, %v258
        %v336 = vmax.f32 %v332, %v263
        %v337 = vmax.f32 %v333, %v264
        %v338 = vmax.f32 %v334, %v265
        %v339 = vmax.f32 %v335, %v266
        %v340 = vmax.f32 %v336, %v271
        %v341 = vmax.f32 %v337, %v272
        %v342 = vmax.f32 %v338, %v273
        %v343 = vmax.f32 %v339, %v274
        %v348 = vrot.slane %v341, 7
        %v349 = vsel %vm284, %v348, %v340
        %v350 = vrot.slane %v342, 6
        %v351 = vsel %vm287, %v350, %v349
        %v352 = vrot.slane %v343, 5
        %v353 = vsel %vm290, %v352, %v351
        %v355 = vsel %vm308, %v353, -inf
        %356 = vmax.xlane.f32.xlu0 %v355
        %v357 = vpop.xlane.xlu0 %356
        %v358 = vsel %vm312, %v353, -inf
        %359 = vmax.xlane.f32.xlu0 %v358
        %v360 = vpop.xlane.xlu0 %359
        %v365 = vrot.slane %v196, 7
        %v366 = vsel %vm284, %v365, %v195
        %v367 = vrot.slane %v197, 6
        %v368 = vsel %vm287, %v367, %v366
        %v369 = vrot.slane %v198, 5
        %v370 = vsel %vm290, %v369, %v368
        %vm372 = vcmask 44032
        %v373 = vsel %vm372, %v370, -inf
        %374 = vmax.xlane.f32.xlu0 %v373
        %v375 = vpop.xlane.xlu0 %374
        %vm376 = vcmask 85032
        %v377 = vsel %vm376, %v370, -inf
        %378 = vmax.xlane.f32.xlu0 %v377
        %v379 = vpop.xlane.xlu0 %378
        %vm380 = vcmask 126032
        %v381 = vsel %vm380, %v370, -inf
        %382 = vmax.xlane.f32.xlu0 %v381
        %v383 = vpop.xlane.xlu0 %382
        %v384 = vmax.f32 %v191, %v199
        %v385 = vmax.f32 %v192, %v200
        %v386 = vmax.f32 %v193, %v201
        %v387 = vmax.f32 %v194, %v202
        %v388 = vmax.f32 %v384, %v207
        %v389 = vmax.f32 %v385, %v208
        %v390 = vmax.f32 %v386, %v209
        %v391 = vmax.f32 %v387, %v210
        %v392 = vmax.f32 %v388, %v215
        %v393 = vmax.f32 %v389, %v216
        %v394 = vmax.f32 %v390, %v217
        %v395 = vmax.f32 %v391, %v218
        %v396 = vmax.f32 %v392, %v223
        %v397 = vmax.f32 %v393, %v224
        %v398 = vmax.f32 %v394, %v225
        %v399 = vmax.f32 %v395, %v226
        %v400 = vmax.f32 %v396, %v231
        %v401 = vmax.f32 %v397, %v232
        %v402 = vmax.f32 %v398, %v233
        %v403 = vmax.f32 %v399, %v234
        %v408 = vrot.slane %v401, 7
        %v409 = vsel %vm284, %v408, %v400
        %v410 = vrot.slane %v402, 6
        %v411 = vsel %vm287, %v410, %v409
        %v412 = vrot.slane %v403, 5
        %v413 = vsel %vm290, %v412, %v411
        %v415 = vsel %vm372, %v413, -inf
        %416 = vmax.xlane.f32.xlu0 %v415
        %v417 = vpop.xlane.xlu0 %416
        %v418 = vsel %vm376, %v413, -inf
        %419 = vmax.xlane.f32.xlu0 %v418
        %v420 = vpop.xlane.xlu0 %419
        %v421 = vsel %vm380, %v413, -inf
        %422 = vmax.xlane.f32.xlu0 %v421
        %v423 = vpop.xlane.xlu0 %422
        %v424 = vmax.f32 %v231, %v239
        %v425 = vmax.f32 %v232, %v240
        %v426 = vmax.f32 %v233, %v241
        %v427 = vmax.f32 %v234, %v242
        %v428 = vmax.f32 %v424, %v247
        %v429 = vmax.f32 %v425, %v248
        %v430 = vmax.f32 %v426, %v249
        %v431 = vmax.f32 %v427, %v250
        %v432 = vmax.f32 %v428, %v255
        %v433 = vmax.f32 %v429, %v256
        %v434 = vmax.f32 %v430, %v257
        %v435 = vmax.f32 %v431, %v258
        %v436 = vmax.f32 %v432, %v263
        %v437 = vmax.f32 %v433, %v264
        %v438 = vmax.f32 %v434, %v265
        %v439 = vmax.f32 %v435, %v266
        %v440 = vmax.f32 %v436, %v271
        %v441 = vmax.f32 %v437, %v272
        %v442 = vmax.f32 %v438, %v273
        %v443 = vmax.f32 %v439, %v274
        %v448 = vrot.slane %v441, 7
        %v449 = vsel %vm284, %v448, %v440
        %v450 = vrot.slane %v442, 6
        %v451 = vsel %vm287, %v450, %v449
        %v452 = vrot.slane %v443, 5
        %v453 = vsel %vm290, %v452, %v451
        %v455 = vsel %vm372, %v453, -inf
        %456 = vmax.xlane.f32.xlu0 %v455
        %v457 = vpop.xlane.xlu0 %456
        %v458 = vsel %vm376, %v453, -inf
        %459 = vmax.xlane.f32.xlu0 %v458
        %v460 = vpop.xlane.xlu0 %459
        %v461 = vsel %vm380, %v453, -inf
        %462 = vmax.xlane.f32.xlu0 %v461
        %v463 = vpop.xlane.xlu0 %462
        %vm464 = vcmask 7168
        %v465 = vsel %vm464, %v296, %v311
        %vm466 = vcmask 15360
        %v467 = vsel %vm466, %v465, %v315
        %vm468 = vcmask 23552
        %v469 = vsel %vm468, %v467, %v357
        %vm470 = vcmask 31744
        %v471 = vsel %vm470, %v469, %v360
        %vm472 = vcmask 39936
        %v473 = vsel %vm472, %v471, %v375
        %vm474 = vcmask 48128
        %v475 = vsel %vm474, %v473, %v379
        %vm476 = vcmask 56320
        %v477 = vsel %vm476, %v475, %v383
        %vm478 = vcmask 64512
        %v479 = vsel %vm478, %v477, %v417
        %vm480 = vcmask 72704
        %v481 = vsel %vm480, %v479, %v420
        %vm482 = vcmask 80896
        %v483 = vsel %vm482, %v481, %v423
        %vm484 = vcmask 89088
        %v485 = vsel %vm484, %v483, %v457
        %vm486 = vcmask 97280
        %v487 = vsel %vm486, %v485, %v460
        %vm488 = vcmask 105472
        %v489 = vsel %vm488, %v487, %v463
        %vm490 = vcmask 109568
        %491 = vst.msk [vmem:[%s153] sm:$0xf] %vm490, %v489
        %s492 = sand.u32 %s68, 1
        %s493 = scalar_lea.sflag [#allocation4], %s492
        %s494 = sand.u32 %s68, 1
        %s495 = smul.addr %s494, 4
        %s496 = scalar_lea.vmem [#allocation5], %s495
        // Predicated region
        $region29: #{tpu_custom_call.1} parent=23 // pred_check
          %p497 = pneg %p78
        $region30: #{tpu_custom_call.1} parent=23 // pred_check_branch
          %499 = sbr.rel (%p497) target = $region32
        $region31: #{tpu_custom_call.1} parent=23 // pred_region
          %s501 = ssub.s32 64, 64
          %502 = vsyncadd %s493, %s501
          %s503 = sadd.s32 %s23, %s22
          %s504 = smul.addr %s503, 64
          %s505 = scalar_lea.hbm %s1, %s504
          %s507 = sshll.u32 %s496, 4
          %s508 = int_to_ptr.vmem [resolvable:$true] %s507
          %510 = dma.vmem_to_hbm [thread:$0]  %s508, 64, %s505, %s493
        $region32: #{tpu_custom_call.1} parent=23 // pred_fallthru
          _
      $region24: #{tpu_custom_call.1} parent=5 // pred_fallthru
        _
      %p511 = scmp.le.s32.totalorder 2, %s13
      // Predicated region
      $region33: #{tpu_custom_call.1} parent=5 // pred_check
        %p512 = pneg %p511
      $region34: #{tpu_custom_call.1} parent=5 // pred_check_branch
        %514 = sbr.rel (%p512) target = $region36
      $region35: #{tpu_custom_call.1} parent=5 // pred_region
        %s515 = ssub.s32 %s13, 2
        // Predicated region
        $region37: #{tpu_custom_call.1} parent=35 // pred_check
          %p516 = pneg %p84
        $region38: #{tpu_custom_call.1} parent=35 // pred_check_branch
          %518 = sbr.rel (%p516) target = $region40
        $region39: #{tpu_custom_call.1} parent=35 // pred_region
          %s519 = sand.u32 %s69, 1
          %s520 = scalar_lea.sflag [#allocation4], %s519
          %s521 = sand.u32 %s69, 1
          %s522 = smul.addr %s521, 4
          %s523 = scalar_lea.vmem [#allocation5], %s522
          %524 = dma.done %s520, 64
        $region40: #{tpu_custom_call.1} parent=35 // pred_fallthru
          _
      $region36: #{tpu_custom_call.1} parent=5 // pred_fallthru
        _
    $region6: #{tpu_custom_call.1} parent=1 // loop_footer
      %s17 = sadd.s32 1, %s13
    $region7: #{tpu_custom_call.1} parent=1 // loop_footer_branch
      %12 = sbr.rel target = $region3
    $region8: #{tpu_custom_call.1} parent=1 // loop_exit
      _
    %525 = vsyncpa [#allocation3], 1
    %s526 = scalar_lea.sflag [#allocation3], 1
    %527 = vsyncpa %s526, 1
    %528 = vsyncpa [#allocation4], 1
    %s529 = scalar_lea.sflag [#allocation4], 1
    %530 = vsyncpa %s529, 1

</llo_original>
